<compile_context>
chip_gen: v5e
topology: v5e:2x2
jax: 0.10.0
libtpu: 0.0.40
codegen_flags: <defaults>
</compile_context>

<pallas_src>
import functools

import jax
import jax.numpy as jnp
from jax import lax
from jax.experimental import pallas as pl
from jax.experimental.pallas import tpu as pltpu


def _round_up(a, b):
    return (a + b - 1) // b * b


def _ffn_kernel(x_ref, g_ref, beta_ref, w1_ref, b1_ref, w2_ref, b2_ref, o_ref,
                xn_ref, acc_ref, *, eps, d_true):
    # Grid: (row tiles, hidden tiles). Axis 1 streams the hidden dim (reduction
    # for fc2), so init/finalize are gated on it.
    h_idx = pl.program_id(1)

    @pl.when(h_idx == 0)
    def _():
        # LayerNorm over the (true) feature dim, f32 statistics.
        x = x_ref[...].astype(jnp.float32)            # (tm, D_pad)
        mean = jnp.sum(x, axis=-1, keepdims=True) / d_true
        if d_true == x.shape[-1]:
            cent = x - mean
        else:
            # Padded feature columns are zero in x but must not bias the
            # variance; mask them out of the centered residual.
            cols = lax.broadcasted_iota(jnp.int32, x.shape, 1)
            cent = jnp.where(cols < d_true, x - mean, 0.0)
        var = jnp.sum(cent * cent, axis=-1, keepdims=True) / d_true
        xn = (x - mean) * lax.rsqrt(var + eps)
        xn = xn * g_ref[...].astype(jnp.float32) + beta_ref[...].astype(jnp.float32)
        # Cache LN output in the weight dtype (bf16 weights -> bf16 MXU path).
        xn_ref[...] = xn.astype(xn_ref.dtype)
        acc_ref[...] = jnp.zeros_like(acc_ref)

    # fc1 (this hidden tile) + SiLU, f32 accumulation.
    h = jnp.dot(xn_ref[...], w1_ref[...], preferred_element_type=jnp.float32)
    h = h + b1_ref[...].astype(jnp.float32)           # (tm, th) + (1, th)
    h = h * jax.nn.sigmoid(h)                         # SiLU / swish (EUP)

    # Dropout: inference mode -> identity.
    # TODO(synk): training-mode dropout (pltpu.prng_random_bits mask) not emitted.

    # fc2 partial product for this hidden tile, accumulated in f32.
    acc_ref[...] += jnp.dot(h.astype(w2_ref.dtype), w2_ref[...],
                            preferred_element_type=jnp.float32)

    @pl.when(h_idx == pl.num_programs(1) - 1)
    def _():
        out = acc_ref[...] + b2_ref[...].astype(jnp.float32)
        o_ref[...] = out.astype(o_ref.dtype)


def feed_forward_module(x, params, *, eps=1e-5, tm=256, th=512):
    """x: (B, S, D) -> (B, S, D)."""
    B, S, D = x.shape
    gamma, beta, w1, b1, w2, b2 = params
    H = w1.shape[1]

    M = B * S
    # Row tile: big (MXU-filling) by default, clamped for tiny inputs.
    tm = min(tm, _round_up(M, 8))
    M_pad = _round_up(M, tm)
    # Lane-dense feature dims.
    D_pad = _round_up(D, 128)
    th = min(th, _round_up(H, 128))
    H_pad = _round_up(H, th)

    # Zero-pad everything; zero gamma/beta/weight/bias pads guarantee padded
    # columns/rows contribute nothing to the real outputs.
    x2d = jnp.pad(x.reshape(M, D), ((0, M_pad - M), (0, D_pad - D)))
    gamma_p = jnp.pad(gamma.reshape(1, D), ((0, 0), (0, D_pad - D)))
    beta_p = jnp.pad(beta.reshape(1, D), ((0, 0), (0, D_pad - D)))
    w1_p = jnp.pad(w1, ((0, D_pad - D), (0, H_pad - H)))
    b1_p = jnp.pad(b1.reshape(1, H), ((0, 0), (0, H_pad - H)))
    w2_p = jnp.pad(w2, ((0, H_pad - H), (0, D_pad - D)))
    b2_p = jnp.pad(b2.reshape(1, D), ((0, 0), (0, D_pad - D)))

    grid = (M_pad // tm, H_pad // th)
    kernel = functools.partial(_ffn_kernel, eps=eps, d_true=D)

    itemsize = x2d.dtype.itemsize
    n_row_tiles = grid[0]
    cost = pl.CostEstimate(
        flops=int(4 * M_pad * D_pad * H_pad),          # two matmuls
        transcendentals=int(M_pad * H_pad),            # sigmoid
        bytes_accessed=int(
            (2 * M_pad * D_pad) * itemsize
            + n_row_tiles * (w1_p.size * w1_p.dtype.itemsize
                             + w2_p.size * w2_p.dtype.itemsize)),
    )

    out2d = pl.pallas_call(
        kernel,
        out_shape=jax.ShapeDtypeStruct((M_pad, D_pad), x.dtype),
        grid_spec=pltpu.PrefetchScalarGridSpec(
            num_scalar_prefetch=0,
            grid=grid,
            in_specs=[
                pl.BlockSpec((tm, D_pad), lambda i, h: (i, 0)),   # x rows
                pl.BlockSpec((1, D_pad), lambda i, h: (0, 0)),    # ln gamma
                pl.BlockSpec((1, D_pad), lambda i, h: (0, 0)),    # ln beta
                pl.BlockSpec((D_pad, th), lambda i, h: (0, h)),   # fc1 w tile
                pl.BlockSpec((1, th), lambda i, h: (0, h)),       # fc1 b tile
                pl.BlockSpec((th, D_pad), lambda i, h: (h, 0)),   # fc2 w tile
                pl.BlockSpec((1, D_pad), lambda i, h: (0, 0)),    # fc2 bias
            ],
            out_specs=pl.BlockSpec((tm, D_pad), lambda i, h: (i, 0)),
            scratch_shapes=[
                pltpu.VMEM((tm, D_pad), w1.dtype),        # cached LN output
                pltpu.VMEM((tm, D_pad), jnp.float32),     # fc2 accumulator
            ],
        ),
        compiler_params=pltpu.CompilerParams(
            dimension_semantics=("parallel", "arbitrary")),
        cost_estimate=cost,
    )(x2d, gamma_p, beta_p, w1_p, b1_p, w2_p, b2_p)

    return out2d[:M, :D].reshape(B, S, D)


def init_params(key, input_dim, expansion_factor, dtype=jnp.float32):
    """Deterministic init matching the PyTorch module's parameter shapes."""
    hidden = int(input_dim * expansion_factor)
    k1, k2, k3, k4 = jax.random.split(key, 4)

    # LayerNorm: gamma = 1, beta = 0 (torch defaults)
    gamma = jnp.ones((1, input_dim), dtype)
    beta = jnp.zeros((1, input_dim), dtype)

    # Linear layers: uniform(-1/sqrt(fan_in), 1/sqrt(fan_in)) like torch;
    # stored as (in, out) = torch weight transposed.
    lim1 = 1.0 / (input_dim ** 0.5)
    w1 = jax.random.uniform(k1, (input_dim, hidden), dtype, -lim1, lim1)
    b1 = jax.random.uniform(k2, (1, hidden), dtype, -lim1, lim1)

    lim2 = 1.0 / (hidden ** 0.5)
    w2 = jax.random.uniform(k3, (hidden, input_dim), dtype, -lim2, lim2)
    b2 = jax.random.uniform(k4, (1, input_dim), dtype, -lim2, lim2)

    return gamma, beta, w1, b1, w2, b2


def _reference(x, params, eps=1e-5):
    gamma, beta, w1, b1, w2, b2 = params
    x = x.astype(jnp.float32)
    gamma, beta, w1, b1, w2, b2 = [p.astype(jnp.float32)
                                   for p in (gamma, beta, w1, b1, w2, b2)]
    mean = jnp.mean(x, axis=-1, keepdims=True)
    var = jnp.mean((x - mean) ** 2, axis=-1, keepdims=True)
    xn = (x - mean) / jnp.sqrt(var + eps) * gamma[0] + beta[0]
    h = xn @ w1 + b1[0]
    h = h * jax.nn.sigmoid(h)
    return h @ w2 + b2[0]


if __name__ == "__main__":
    # Case 1: lane-aligned shapes, f32 (exact check vs reference).
    B, S, D = 2, 8, 128
    expansion_factor = 4          # hidden = 512
    dropout = 0.1                 # inference: identity

    key = jax.random.PRNGKey(0)
    kx, kp = jax.random.split(key)
    x = jax.random.normal(kx, (B, S, D), jnp.float32)
    params = init_params(kp, D, expansion_factor)

    out = jax.block_until_ready(feed_forward_module(x, params))
    ref = _reference(x, params)
    assert out.shape == (B, S, D)
    assert jnp.allclose(out, ref, atol=1e-4, rtol=1e-4), "f32 mismatch vs reference"

    # Case 2: unaligned shapes (exercises row/lane padding path), f32.
    B2, S2, D2 = 3, 7, 96
    x2 = jax.random.normal(jax.random.PRNGKey(1), (B2, S2, D2), jnp.float32)
    params2 = init_params(jax.random.PRNGKey(2), D2, expansion_factor)
    out2 = jax.block_until_ready(feed_forward_module(x2, params2))
    ref2 = _reference(x2, params2)
    assert out2.shape == (B2, S2, D2)
    assert jnp.allclose(out2, ref2, atol=1e-4, rtol=1e-4), "padded-case mismatch"

    # Case 3: bf16 streamed operands, f32 accumulation inside the kernel.
    xb = x.astype(jnp.bfloat16)
    params_b = jax.tree_util.tree_map(lambda p: p.astype(jnp.bfloat16), params)
    outb = jax.block_until_ready(feed_forward_module(xb, params_b))
    assert outb.dtype == jnp.bfloat16
    assert bool(jnp.all(jnp.isfinite(outb.astype(jnp.float32))))
    assert jnp.allclose(outb.astype(jnp.float32), ref, atol=1e-1, rtol=1e-1), \
        "bf16 mismatch vs f32 reference"

    print("KERNEL_OK")
</pallas_src>

<mosaic_0001>
module attributes {stable_mosaic.version = 11 : i64} {
  func.func @_ffn_kernel(%arg0: i32, %arg1: i32, %arg2: memref<16x128xf32, #tpu.memory_space<vmem>>, %arg3: memref<1x128xf32, #tpu.memory_space<vmem>>, %arg4: memref<1x128xf32, #tpu.memory_space<vmem>>, %arg5: memref<128x512xf32, #tpu.memory_space<vmem>>, %arg6: memref<1x512xf32, #tpu.memory_space<vmem>>, %arg7: memref<512x128xf32, #tpu.memory_space<vmem>>, %arg8: memref<1x128xf32, #tpu.memory_space<vmem>>, %arg9: memref<16x128xf32, #tpu.memory_space<vmem>>, %arg10: memref<16x128xf32, #tpu.memory_space<vmem>>, %arg11: memref<16x128xf32, #tpu.memory_space<vmem>>) attributes {dimension_semantics = [#tpu.dimension_semantics<parallel>, #tpu.dimension_semantics<arbitrary>], iteration_bounds = array<i64: 1, 1>, scalar_prefetch = 0 : i64, scratch_operands = 2 : i64, tpu.core_type = #tpu.core_type<tc>, window_params = [{transform_indices = @transform_0, window_bounds = array<i64: 16, 128>}, {pipeline_mode = #tpu.pipeline_mode<synchronous>, transform_indices = @transform_1, window_bounds = array<i64: 1, 128>}, {pipeline_mode = #tpu.pipeline_mode<synchronous>, transform_indices = @transform_2, window_bounds = array<i64: 1, 128>}, {transform_indices = @transform_3, window_bounds = array<i64: 128, 512>}, {transform_indices = @transform_4, window_bounds = array<i64: 1, 512>}, {transform_indices = @transform_5, window_bounds = array<i64: 512, 128>}, {pipeline_mode = #tpu.pipeline_mode<synchronous>, transform_indices = @transform_6, window_bounds = array<i64: 1, 128>}, {transform_indices = @transform_7, window_bounds = array<i64: 16, 128>}]} {
    %c0_i32 = arith.constant 0 : i32
    %0 = arith.cmpi eq, %arg1, %c0_i32 : i32
    %1 = arith.extui %0 : i1 to i32
    %c0_i32_0 = arith.constant 0 : i32
    %2 = arith.cmpi ne, %1, %c0_i32_0 : i32
    scf.if %2 {
      %c0_16 = arith.constant 0 : index
      %c0_17 = arith.constant 0 : index
      %23 = vector.load %arg2[%c0_16, %c0_17] : memref<16x128xf32, #tpu.memory_space<vmem>>, vector<16x128xf32>
      %cst_18 = arith.constant dense<0.000000e+00> : vector<16xf32>
      %24 = vector.multi_reduction <add>, %23, %cst_18 [1] : vector<16x128xf32> to vector<16xf32>
      %25 = vector.shape_cast %24 : vector<16xf32> to vector<16x1xf32>
      %cst_19 = arith.constant 1.280000e+02 : f32
      %26 = vector.broadcast %cst_19 : f32 to vector<16x1xf32>
      %27 = arith.divf %25, %26 : vector<16x1xf32>
      %28 = vector.broadcast %27 : vector<16x1xf32> to vector<16x128xf32>
      %29 = arith.subf %23, %28 : vector<16x128xf32>
      %30 = arith.mulf %29, %29 : vector<16x128xf32>
      %cst_20 = arith.constant dense<0.000000e+00> : vector<16xf32>
      %31 = vector.multi_reduction <add>, %30, %cst_20 [1] : vector<16x128xf32> to vector<16xf32>
      %32 = vector.shape_cast %31 : vector<16xf32> to vector<16x1xf32>
      %cst_21 = arith.constant 1.280000e+02 : f32
      %33 = vector.broadcast %cst_21 : f32 to vector<16x1xf32>
      %34 = arith.divf %32, %33 : vector<16x1xf32>
      %35 = vector.broadcast %27 : vector<16x1xf32> to vector<16x128xf32>
      %36 = arith.subf %23, %35 : vector<16x128xf32>
      %cst_22 = arith.constant 9.99999974E-6 : f32
      %37 = vector.broadcast %cst_22 : f32 to vector<16x1xf32>
      %38 = arith.addf %34, %37 : vector<16x1xf32>
      %39 = math.rsqrt %38 : vector<16x1xf32>
      %40 = vector.broadcast %39 : vector<16x1xf32> to vector<16x128xf32>
      %41 = arith.mulf %36, %40 : vector<16x128xf32>
      %c0_23 = arith.constant 0 : index
      %c0_24 = arith.constant 0 : index
      %42 = vector.load %arg3[%c0_23, %c0_24] : memref<1x128xf32, #tpu.memory_space<vmem>>, vector<1x128xf32>
      %43 = vector.broadcast %42 : vector<1x128xf32> to vector<16x128xf32>
      %44 = arith.mulf %41, %43 : vector<16x128xf32>
      %c0_25 = arith.constant 0 : index
      %c0_26 = arith.constant 0 : index
      %45 = vector.load %arg4[%c0_25, %c0_26] : memref<1x128xf32, #tpu.memory_space<vmem>>, vector<1x128xf32>
      %46 = vector.broadcast %45 : vector<1x128xf32> to vector<16x128xf32>
      %47 = arith.addf %44, %46 : vector<16x128xf32>
      %c0_27 = arith.constant 0 : index
      %c0_28 = arith.constant 0 : index
      %48 = vector.load %arg10[%c0_27, %c0_28] : memref<16x128xf32, #tpu.memory_space<vmem>>, vector<16x128xf32>
      tpu.vector_store %arg10[%c0_27, %c0_28], %47 {strides = array<i32>} : memref<16x128xf32, #tpu.memory_space<vmem>>, vector<16x128xf32>,
      %cst_29 = arith.constant 0.000000e+00 : f32
      %49 = vector.broadcast %cst_29 : f32 to vector<16x128xf32>
      %c0_30 = arith.constant 0 : index
      %c0_31 = arith.constant 0 : index
      %50 = vector.load %arg11[%c0_30, %c0_31] : memref<16x128xf32, #tpu.memory_space<vmem>>, vector<16x128xf32>
      tpu.vector_store %arg11[%c0_30, %c0_31], %49 {strides = array<i32>} : memref<16x128xf32, #tpu.memory_space<vmem>>, vector<16x128xf32>,
    } else {
    }
    %c0 = arith.constant 0 : index
    %c0_1 = arith.constant 0 : index
    %3 = vector.load %arg10[%c0, %c0_1] : memref<16x128xf32, #tpu.memory_space<vmem>>, vector<16x128xf32>
    %c0_2 = arith.constant 0 : index
    %c0_3 = arith.constant 0 : index
    %4 = vector.load %arg5[%c0_2, %c0_3] : memref<128x512xf32, #tpu.memory_space<vmem>>, vector<128x512xf32>
    %cst = arith.constant dense<0.000000e+00> : vector<16x512xf32>
    %5 = tpu.matmul %3, %4, %cst {dimension_numbers = #tpu.dot_dimension_numbers<[1], [0], [0], [1], [0, 0, 1, 1], [], []>} : vector<16x128xf32>, vector<128x512xf32>, vector<16x512xf32> -> vector<16x512xf32>
    %c0_4 = arith.constant 0 : index
    %c0_5 = arith.constant 0 : index
    %6 = vector.load %arg6[%c0_4, %c0_5] : memref<1x512xf32, #tpu.memory_space<vmem>>, vector<1x512xf32>
    %7 = vector.broadcast %6 : vector<1x512xf32> to vector<16x512xf32>
    %8 = arith.addf %5, %7 : vector<16x512xf32>
    %9 = arith.negf %8 : vector<16x512xf32>
    %10 = math.exp %9 : vector<16x512xf32>
    %cst_6 = arith.constant 1.000000e+00 : f32
    %11 = vector.broadcast %cst_6 : f32 to vector<16x512xf32>
    %12 = arith.addf %11, %10 : vector<16x512xf32>
    %13 = arith.divf %11, %12 : vector<16x512xf32>
    %14 = arith.mulf %8, %13 : vector<16x512xf32>
    %c0_7 = arith.constant 0 : index
    %c0_8 = arith.constant 0 : index
    %15 = vector.load %arg11[%c0_7, %c0_8] : memref<16x128xf32, #tpu.memory_space<vmem>>, vector<16x128xf32>
    %c0_9 = arith.constant 0 : index
    %c0_10 = arith.constant 0 : index
    %16 = vector.load %arg7[%c0_9, %c0_10] : memref<512x128xf32, #tpu.memory_space<vmem>>, vector<512x128xf32>
    %cst_11 = arith.constant dense<0.000000e+00> : vector<16x128xf32>
    %17 = tpu.matmul %14, %16, %cst_11 {dimension_numbers = #tpu.dot_dimension_numbers<[1], [0], [0], [1], [0, 0, 1, 1], [], []>} : vector<16x512xf32>, vector<512x128xf32>, vector<16x128xf32> -> vector<16x128xf32>
    %18 = arith.addf %15, %17 : vector<16x128xf32>
    %c0_12 = arith.constant 0 : index
    %c0_13 = arith.constant 0 : index
    %19 = vector.load %arg11[%c0_12, %c0_13] : memref<16x128xf32, #tpu.memory_space<vmem>>, vector<16x128xf32>
    tpu.vector_store %arg11[%c0_12, %c0_13], %18 {strides = array<i32>} : memref<16x128xf32, #tpu.memory_space<vmem>>, vector<16x128xf32>,
    %c0_i32_14 = arith.constant 0 : i32
    %20 = arith.cmpi eq, %arg1, %c0_i32_14 : i32
    %21 = arith.extui %20 : i1 to i32
    %c0_i32_15 = arith.constant 0 : i32
    %22 = arith.cmpi ne, %21, %c0_i32_15 : i32
    scf.if %22 {
      %c0_16 = arith.constant 0 : index
      %c0_17 = arith.constant 0 : index
      %23 = vector.load %arg11[%c0_16, %c0_17] : memref<16x128xf32, #tpu.memory_space<vmem>>, vector<16x128xf32>
      %c0_18 = arith.constant 0 : index
      %c0_19 = arith.constant 0 : index
      %24 = vector.load %arg8[%c0_18, %c0_19] : memref<1x128xf32, #tpu.memory_space<vmem>>, vector<1x128xf32>
      %25 = vector.broadcast %24 : vector<1x128xf32> to vector<16x128xf32>
      %26 = arith.addf %23, %25 : vector<16x128xf32>
      %c0_20 = arith.constant 0 : index
      %c0_21 = arith.constant 0 : index
      %27 = vector.load %arg9[%c0_20, %c0_21] : memref<16x128xf32, #tpu.memory_space<vmem>>, vector<16x128xf32>
      tpu.vector_store %arg9[%c0_20, %c0_21], %26 {strides = array<i32>} : memref<16x128xf32, #tpu.memory_space<vmem>>, vector<16x128xf32>,
    } else {
    }
    return
  }
  func.func @transform_0(%arg0: i32, %arg1: i32) -> (i32, i32) {
    %c0_i32 = arith.constant 0 : i32
    %c0_i32_0 = arith.constant 0 : i32
    return %arg0, %c0_i32 : i32, i32
  }
  func.func @transform_1(%arg0: i32, %arg1: i32) -> (i32, i32) {
    %c0_i32 = arith.constant 0 : i32
    %c0_i32_0 = arith.constant 0 : i32
    %c0_i32_1 = arith.constant 0 : i32
    return %c0_i32, %c0_i32_0 : i32, i32
  }
  func.func @transform_2(%arg0: i32, %arg1: i32) -> (i32, i32) {
    %c0_i32 = arith.constant 0 : i32
    %c0_i32_0 = arith.constant 0 : i32
    %c0_i32_1 = arith.constant 0 : i32
    return %c0_i32, %c0_i32_0 : i32, i32
  }
  func.func @transform_3(%arg0: i32, %arg1: i32) -> (i32, i32) {
    %c0_i32 = arith.constant 0 : i32
    %c0_i32_0 = arith.constant 0 : i32
    return %c0_i32, %arg1 : i32, i32
  }
  func.func @transform_4(%arg0: i32, %arg1: i32) -> (i32, i32) {
    %c0_i32 = arith.constant 0 : i32
    %c0_i32_0 = arith.constant 0 : i32
    return %c0_i32, %arg1 : i32, i32
  }
  func.func @transform_5(%arg0: i32, %arg1: i32) -> (i32, i32) {
    %c0_i32 = arith.constant 0 : i32
    %c0_i32_0 = arith.constant 0 : i32
    return %arg1, %c0_i32 : i32, i32
  }
  func.func @transform_6(%arg0: i32, %arg1: i32) -> (i32, i32) {
    %c0_i32 = arith.constant 0 : i32
    %c0_i32_0 = arith.constant 0 : i32
    %c0_i32_1 = arith.constant 0 : i32
    return %c0_i32, %c0_i32_0 : i32, i32
  }
  func.func @transform_7(%arg0: i32, %arg1: i32) -> (i32, i32) {
    %c0_i32 = arith.constant 0 : i32
    %c0_i32_0 = arith.constant 0 : i32
    return %arg0, %c0_i32 : i32, i32
  }
}

</mosaic_0001>

<llo_original>
// kernel: tpu_custom_call.1
$region0: #{tpu_custom_call.1}
  #allocation0 [shape = 'u32[]', space=smem, size = 0x4, offset = 0x4, fixed_abs, tag = 'smem constant byte address 0x4 - core index']
  #allocation1 [shape = 'u32[72,128]{1,0:T(1,128)}', space=vmem, size = 0x9000, scoped, tag = 'internal scratch']
  #allocation2 [shape = 'f32[16,128]{1,0:T(8,128)}', space=vmem, size = 0x2000, scoped, tag = 'scratch operand']
  #allocation3 [shape = 'f32[16,128]{1,0:T(8,128)}', space=vmem, size = 0x2000, scoped, tag = 'scratch operand']
  %s0 = inlined_call_operand.hbm [shape: f32[16,128], index: 0, kind: input, shape index: {}]
  %s1 = inlined_call_operand.hbm [shape: f32[1,128], index: 1, kind: input, shape index: {}]
  %s2 = inlined_call_operand.vmem [shape: f32[1,128], index: 2, kind: input, shape index: {}]
  %s3 = inlined_call_operand.hbm [shape: f32[128,512], index: 3, kind: input, shape index: {}]
  %s4 = inlined_call_operand.hbm [shape: f32[1,512], index: 4, kind: input, shape index: {}]
  %s5 = inlined_call_operand.hbm [shape: f32[512,128], index: 5, kind: input, shape index: {}]
  %s6 = inlined_call_operand.vmem [shape: f32[1,128], index: 6, kind: input, shape index: {}]
  %s7 = inlined_call_operand.hbm [shape: f32[16,128], index: 7, kind: output, shape index: {}]
  %s8 = sld [smem:[#allocation0]]
  $region66: #{tpu_custom_call.1} parent=0
    _
  %s10 = ssub.s32 1, %s8
  %s11 = scalar_select 0, %s10, %s8
  $region1: #{tpu_custom_call.1} parent=0
    #allocation4 [shape = 'u8[8192]{0}', space=vmem, size = 0x2000, scoped, tag = 'input window, operand 0, single buffered']
    #allocation5 [shape = 's32[1]{0}', space=sflag, size = 0x4, scoped, tag = 'scoped memory for tpu_custom_call.1']
    #allocation6 [shape = 's32[1]{0}', space=sflag, size = 0x4, scoped, tag = 'scoped memory for tpu_custom_call.1']
    #allocation7 [shape = 'u8[512]{0}', space=vmem, size = 0x400, scoped, tag = 'input window, operand 1, single buffered']
    #allocation8 [shape = 's32[1]{0}', space=sflag, size = 0x4, scoped, tag = 'scoped memory for tpu_custom_call.1']
    #allocation9 [shape = 'u8[262144]{0}', space=vmem, size = 0x40000, scoped, tag = 'input window, operand 3, single buffered']
    #allocation10 [shape = 'u8[2048]{0}', space=vmem, size = 0x800, scoped, tag = 'input window, operand 4, single buffered']
    #allocation11 [shape = 's32[1]{0}', space=sflag, size = 0x4, scoped, tag = 'scoped memory for tpu_custom_call.1']
    #allocation12 [shape = 'u8[262144]{0}', space=vmem, size = 0x40000, scoped, tag = 'input window, operand 5, single buffered']
    #allocation13 [shape = 'u8[8192]{0}', space=vmem, size = 0x2000, scoped, tag = 'output window, operand 0, single buffered']
    %12 = vsyncpa [#allocation5], 0
    %13 = vsyncpa [#allocation8], 0
    %14 = vsyncpa [#allocation11], 0
    %15 = vsyncpa [#allocation6], 0
    // Predicated region
    $region2: #{tpu_custom_call.1} parent=1 // pred_check
      _
    $region3: #{tpu_custom_call.1} parent=1 // pred_check_branch
      %17 = sbr.rel (0) target = $region5
    $region4: #{tpu_custom_call.1} parent=1 // pred_region
      %19 = vsyncadd [#allocation5], 0
      %s20 = sshll.u32 %s0, 4
      %s21 = int_to_ptr.hbm [resolvable:$true] %s20
      %s22 = sshll.u32 [#allocation4], 4
      %s23 = int_to_ptr.vmem [resolvable:$true] %s22
      %28 = dma.hbm_to_vmem [thread:$0]  %s21, 256, %s23, [#allocation5], 128, 128, 8
    $region5: #{tpu_custom_call.1} parent=1 // pred_fallthru
      _
    // Predicated region
    $region6: #{tpu_custom_call.1} parent=1 // pred_check
      _
    $region7: #{tpu_custom_call.1} parent=1 // pred_check_branch
      %30 = sbr.rel (0) target = $region9
    $region8: #{tpu_custom_call.1} parent=1 // pred_region
      %32 = vsyncadd [#allocation8], 0
      %s34 = sshll.u32 %s1, 4
      %s35 = int_to_ptr.hbm [resolvable:$true] %s34
      %s36 = sshll.u32 [#allocation7], 4
      %s37 = int_to_ptr.vmem [resolvable:$true] %s36
      %39 = dma.hbm_to_vmem [thread:$0]  %s35, 16, %s37, [#allocation8]
    $region9: #{tpu_custom_call.1} parent=1 // pred_fallthru
      _
    // Predicated region
    $region10: #{tpu_custom_call.1} parent=1 // pred_check
      _
    $region11: #{tpu_custom_call.1} parent=1 // pred_check_branch
      %41 = sbr.rel (0) target = $region13
    $region12: #{tpu_custom_call.1} parent=1 // pred_region
      _
    $region13: #{tpu_custom_call.1} parent=1 // pred_fallthru
      _
    // Predicated region
    $region14: #{tpu_custom_call.1} parent=1 // pred_check
      _
    $region15: #{tpu_custom_call.1} parent=1 // pred_check_branch
      %43 = sbr.rel (0) target = $region17
    $region16: #{tpu_custom_call.1} parent=1 // pred_region
      %45 = vsyncadd [#allocation8], 0
      %s46 = sshll.u32 %s3, 4
      %s47 = int_to_ptr.hbm [resolvable:$true] %s46
      %s48 = sshll.u32 [#allocation9], 4
      %s49 = int_to_ptr.vmem [resolvable:$true] %s48
      %54 = dma.hbm_to_vmem [thread:$0]  %s47, 8192, %s49, [#allocation8], 512, 512, 32
    $region17: #{tpu_custom_call.1} parent=1 // pred_fallthru
      _
    // Predicated region
    $region18: #{tpu_custom_call.1} parent=1 // pred_check
      _
    $region19: #{tpu_custom_call.1} parent=1 // pred_check_branch
      %56 = sbr.rel (0) target = $region21
    $region20: #{tpu_custom_call.1} parent=1 // pred_region
      %58 = vsyncadd [#allocation11], 0
      %s60 = sshll.u32 %s4, 4
      %s61 = int_to_ptr.hbm [resolvable:$true] %s60
      %s62 = sshll.u32 [#allocation10], 4
      %s63 = int_to_ptr.vmem [resolvable:$true] %s62
      %65 = dma.hbm_to_vmem [thread:$0]  %s61, 64, %s63, [#allocation11]
    $region21: #{tpu_custom_call.1} parent=1 // pred_fallthru
      _
    // Predicated region
    $region22: #{tpu_custom_call.1} parent=1 // pred_check
      _
    $region23: #{tpu_custom_call.1} parent=1 // pred_check_branch
      %67 = sbr.rel (0) target = $region25
    $region24: #{tpu_custom_call.1} parent=1 // pred_region
      %69 = vsyncadd [#allocation11], 0
      %s70 = sshll.u32 %s5, 4
      %s71 = int_to_ptr.hbm [resolvable:$true] %s70
      %s72 = sshll.u32 [#allocation12], 4
      %s73 = int_to_ptr.vmem [resolvable:$true] %s72
      %78 = dma.hbm_to_vmem [thread:$0]  %s71, 8192, %s73, [#allocation11], 128, 128, 8
    $region25: #{tpu_custom_call.1} parent=1 // pred_fallthru
      _
    // Predicated region
    $region26: #{tpu_custom_call.1} parent=1 // pred_check
      _
    $region27: #{tpu_custom_call.1} parent=1 // pred_check_branch
      %80 = sbr.rel (0) target = $region29
    $region28: #{tpu_custom_call.1} parent=1 // pred_region
      _
    $region29: #{tpu_custom_call.1} parent=1 // pred_fallthru
      _
    // Predicated region
    $region30: #{tpu_custom_call.1} parent=1 // pred_check
      _
    $region31: #{tpu_custom_call.1} parent=1 // pred_check_branch
      %82 = sbr.rel (0) target = $region33
    $region32: #{tpu_custom_call.1} parent=1 // pred_region
      %84 = dma.done [#allocation5], 256
    $region33: #{tpu_custom_call.1} parent=1 // pred_fallthru
      _
    // Predicated region
    $region34: #{tpu_custom_call.1} parent=1 // pred_check
      _
    $region35: #{tpu_custom_call.1} parent=1 // pred_check_branch
      %86 = sbr.rel (0) target = $region37
    $region36: #{tpu_custom_call.1} parent=1 // pred_region
      %88 = dma.done [#allocation8], 16
    $region37: #{tpu_custom_call.1} parent=1 // pred_fallthru
      _
    // Predicated region
    $region38: #{tpu_custom_call.1} parent=1 // pred_check
      _
    $region39: #{tpu_custom_call.1} parent=1 // pred_check_branch
      %90 = sbr.rel (0) target = $region41
    $region40: #{tpu_custom_call.1} parent=1 // pred_region
      %92 = dma.done [#allocation8], 8192
    $region41: #{tpu_custom_call.1} parent=1 // pred_fallthru
      _
    // Predicated region
    $region42: #{tpu_custom_call.1} parent=1 // pred_check
      _
    $region43: #{tpu_custom_call.1} parent=1 // pred_check_branch
      %94 = sbr.rel (0) target = $region45
    $region44: #{tpu_custom_call.1} parent=1 // pred_region
      %96 = dma.done [#allocation11], 64
    $region45: #{tpu_custom_call.1} parent=1 // pred_fallthru
      _
    // Predicated region
    $region46: #{tpu_custom_call.1} parent=1 // pred_check
      _
    $region47: #{tpu_custom_call.1} parent=1 // pred_check_branch
      %98 = sbr.rel (0) target = $region49
    $region48: #{tpu_custom_call.1} parent=1 // pred_region
      %100 = dma.done [#allocation11], 8192
    $region49: #{tpu_custom_call.1} parent=1 // pred_fallthru
      _
    %p101 = scmp.eq.s32.totalorder 0, 0
    // Predicated region
    $region50: #{tpu_custom_call.1} parent=1 // pred_check
      %p102 = pneg %p101
    $region51: #{tpu_custom_call.1} parent=1 // pred_check_branch
      %104 = sbr.rel (%p102) target = $region53
    $region52: #{tpu_custom_call.1} parent=1 // pred_region
      %v105 = vld [vmem:[#allocation4] sm:$0xff]
      %v106 = vld [vmem:[#allocation4 + $0x8] sm:$0xff]
      %107 = vadd.xlane.f32.xlu0 %v105
      %v108 = vpop.xlane.xlu0 %107
      %109 = vadd.xlane.f32.xlu0 %v106
      %v110 = vpop.xlane.xlu0 %109
      %v111 = vrcp.pop 128.0
      %v112 = vmul.f32 128.0, %v111
      %v113 = vsub.f32 1.0, %v112
      %v114 = vmul.f32 %v111, %v113
      %v115 = vadd.f32 %v111, %v114
      %vm116 = vweird.f32 %v111
      %v117 = vsel %vm116, %v111, %v115
      %v118 = vmul.f32 %v108, %v117
      %v119 = vmul.f32 %v110, %v117
      %v120 = vsub.f32 %v105, %v118
      %v121 = vsub.f32 %v106, %v119
      %v122 = vmul.f32 %v120, %v120
      %v123 = vmul.f32 %v121, %v121
      %124 = vadd.xlane.f32.xlu0 %v122
      %v125 = vpop.xlane.xlu0 %124
      %126 = vadd.xlane.f32.xlu0 %v123
      %v127 = vpop.xlane.xlu0 %126
      %v128 = vmul.f32 %v125, %v117
      %v129 = vmul.f32 %v127, %v117
      %v130 = vadd.f32 %v128, 1e-05
      %v131 = vadd.f32 %v129, 1e-05
      %v132 = vrsqrt.pop %v130
      %v133 = vmul.f32 %v132, %v130
      %v134 = vmul.f32 %v133, %v132
      %v135 = vmul.f32 0.5, %v134
      %v136 = vsub.f32 1.5, %v135
      %v137 = vmul.f32 %v132, %v136
      %vm138 = vweird.f32 %v130
      %vm139 = vweird.f32 %v132
      %vm140 = vmor %vm138, %vm139
      %v141 = vsel %vm140, %v132, %v137
      %v142 = vrsqrt.pop %v131
      %v143 = vmul.f32 %v142, %v131
      %v144 = vmul.f32 %v143, %v142
      %v145 = vmul.f32 0.5, %v144
      %v146 = vsub.f32 1.5, %v145
      %v147 = vmul.f32 %v142, %v146
      %vm148 = vweird.f32 %v131
      %vm149 = vweird.f32 %v142
      %vm150 = vmor %vm148, %vm149
      %v151 = vsel %vm150, %v142, %v147
      %v152 = vmul.f32 %v120, %v141
      %v153 = vmul.f32 %v121, %v151
      %v154 = vld [vmem:[#allocation7] sm:$0x1]
      %v156 = vperm.slane %v154, 0
      %v158 = vmul.f32 %v152, %v156
      %v159 = vmul.f32 %v153, %v156
      %v160 = vld [vmem:[%s2] sm:$0x1]
      %v162 = vperm.slane %v160, 0
      %v164 = vadd.f32 %v158, %v162
      %v165 = vadd.f32 %v159, %v162
      %166 = vst [vmem:[#allocation2] sm:$0xff] %v164
      %167 = vst [vmem:[#allocation2 + $0x8] sm:$0xff] %v165
      %168 = vst [vmem:[#allocation3] sm:$0xff] 0.0
      %169 = vst [vmem:[#allocation3 + $0x8] sm:$0xff] 0.0
    $region53: #{tpu_custom_call.1} parent=1 // pred_fallthru
      _
    %v170 = vld [vmem:[#allocation2] sm:$0xff]
    %v171 = vld [vmem:[#allocation2 + $0x8] sm:$0xff]
    %v172 = vld [vmem:[#allocation9] sm:$0xff]
    %v173 = vld [vmem:[#allocation9 + $0x8] sm:$0xff]
    %v174 = vld [vmem:[#allocation9 + $0x10] sm:$0xff]
    %v175 = vld [vmem:[#allocation9 + $0x18] sm:$0xff]
    %v176 = vld [vmem:[#allocation9 + $0x20] sm:$0xff]
    %v177 = vld [vmem:[#allocation9 + $0x28] sm:$0xff]
    %v178 = vld [vmem:[#allocation9 + $0x30] sm:$0xff]
    %v179 = vld [vmem:[#allocation9 + $0x38] sm:$0xff]
    %v180 = vld [vmem:[#allocation9 + $0x40] sm:$0xff]
    %v181 = vld [vmem:[#allocation9 + $0x48] sm:$0xff]
    %v182 = vld [vmem:[#allocation9 + $0x50] sm:$0xff]
    %v183 = vld [vmem:[#allocation9 + $0x58] sm:$0xff]
    %v184 = vld [vmem:[#allocation9 + $0x60] sm:$0xff]
    %v185 = vld [vmem:[#allocation9 + $0x68] sm:$0xff]
    %v186 = vld [vmem:[#allocation9 + $0x70] sm:$0xff]
    %v187 = vld [vmem:[#allocation9 + $0x78] sm:$0xff]
    %v188 = vld [vmem:[#allocation9 + $0x80] sm:$0xff]
    %v189 = vld [vmem:[#allocation9 + $0x88] sm:$0xff]
    %v190 = vld [vmem:[#allocation9 + $0x90] sm:$0xff]
    %v191 = vld [vmem:[#allocation9 + $0x98] sm:$0xff]
    %v192 = vld [vmem:[#allocation9 + $0xa0] sm:$0xff]
    %v193 = vld [vmem:[#allocation9 + $0xa8] sm:$0xff]
    %v194 = vld [vmem:[#allocation9 + $0xb0] sm:$0xff]
    %v195 = vld [vmem:[#allocation9 + $0xb8] sm:$0xff]
    %v196 = vld [vmem:[#allocation9 + $0xc0] sm:$0xff]
    %v197 = vld [vmem:[#allocation9 + $0xc8] sm:$0xff]
    %v198 = vld [vmem:[#allocation9 + $0xd0] sm:$0xff]
    %v199 = vld [vmem:[#allocation9 + $0xd8] sm:$0xff]
    %v200 = vld [vmem:[#allocation9 + $0xe0] sm:$0xff]
    %v201 = vld [vmem:[#allocation9 + $0xe8] sm:$0xff]
    %v202 = vld [vmem:[#allocation9 + $0xf0] sm:$0xff]
    %v203 = vld [vmem:[#allocation9 + $0xf8] sm:$0xff]
    %v204 = vld [vmem:[#allocation9 + $0x100] sm:$0xff]
    %v205 = vld [vmem:[#allocation9 + $0x108] sm:$0xff]
    %v206 = vld [vmem:[#allocation9 + $0x110] sm:$0xff]
    %v207 = vld [vmem:[#allocation9 + $0x118] sm:$0xff]
    %v208 = vld [vmem:[#allocation9 + $0x120] sm:$0xff]
    %v209 = vld [vmem:[#allocation9 + $0x128] sm:$0xff]
    %v210 = vld [vmem:[#allocation9 + $0x130] sm:$0xff]
    %v211 = vld [vmem:[#allocation9 + $0x138] sm:$0xff]
    %v212 = vld [vmem:[#allocation9 + $0x140] sm:$0xff]
    %v213 = vld [vmem:[#allocation9 + $0x148] sm:$0xff]
    %v214 = vld [vmem:[#allocation9 + $0x150] sm:$0xff]
    %v215 = vld [vmem:[#allocation9 + $0x158] sm:$0xff]
    %v216 = vld [vmem:[#allocation9 + $0x160] sm:$0xff]
    %v217 = vld [vmem:[#allocation9 + $0x168] sm:$0xff]
    %v218 = vld [vmem:[#allocation9 + $0x170] sm:$0xff]
    %v219 = vld [vmem:[#allocation9 + $0x178] sm:$0xff]
    %v220 = vld [vmem:[#allocation9 + $0x180] sm:$0xff]
    %v221 = vld [vmem:[#allocation9 + $0x188] sm:$0xff]
    %v222 = vld [vmem:[#allocation9 + $0x190] sm:$0xff]
    %v223 = vld [vmem:[#allocation9 + $0x198] sm:$0xff]
    %v224 = vld [vmem:[#allocation9 + $0x1a0] sm:$0xff]
    %v225 = vld [vmem:[#allocation9 + $0x1a8] sm:$0xff]
    %v226 = vld [vmem:[#allocation9 + $0x1b0] sm:$0xff]
    %v227 = vld [vmem:[#allocation9 + $0x1b8] sm:$0xff]
    %v228 = vld [vmem:[#allocation9 + $0x1c0] sm:$0xff]
    %v229 = vld [vmem:[#allocation9 + $0x1c8] sm:$0xff]
    %v230 = vld [vmem:[#allocation9 + $0x1d0] sm:$0xff]
    %v231 = vld [vmem:[#allocation9 + $0x1d8] sm:$0xff]
    %v232 = vld [vmem:[#allocation9 + $0x1e0] sm:$0xff]
    %v233 = vld [vmem:[#allocation9 + $0x1e8] sm:$0xff]
    %v234 = vld [vmem:[#allocation9 + $0x1f0] sm:$0xff]
    %v235 = vld [vmem:[#allocation9 + $0x1f8] sm:$0xff]
    %v236 = vld [vmem:[#allocation10] sm:$0xf]
    %v238 = vperm.slane %v236, 0
    %v239 = vperm.slane %v236, 1
    %v240 = vperm.slane %v236, 2
    %v241 = vperm.slane %v236, 3
    %246 = vmatpush.msra.mxu0 %v232
    %247 = vmatpush.msra.mxu0 %v228
    %248 = vmatpush.msra.mxu0 %v224
    %249 = vmatpush.msra.mxu0 %v220
    %250 = vmatpush.msra.mxu0 %v216
    %251 = vmatpush.msra.mxu0 %v212
    %252 = vmatpush.msra.mxu0 %v208
    %253 = vmatpush.msra.mxu0 %v204
    %254 = vmatpush.msra.mxu0 %v200
    %255 = vmatpush.msra.mxu0 %v196
    %256 = vmatpush.msra.mxu0 %v192
    %257 = vmatpush.msra.mxu0 %v188
    %258 = vmatpush.msra.mxu0 %v184
    %259 = vmatpush.msra.mxu0 %v180
    %260 = vmatpush.msra.mxu0 %v176
    %261 = vmatpush.msra.mxu0 %v172
    %262 = vmatmul.f32.gmra.mxu0 %v170
    %v263 = vpop.f32.mrf.mxu0
    %v264 = vadd.f32 %v238, %v263
    %265 = vmatmul.f32.gmra.mxu0 %v171
    %v266 = vpop.f32.mrf.mxu0
    %v267 = vadd.f32 %v238, %v266
    %268 = vdwg.mxu0
    %269 = vmatpush.msra.mxu0 %v233
    %270 = vmatpush.msra.mxu0 %v229
    %271 = vmatpush.msra.mxu0 %v225
    %272 = vmatpush.msra.mxu0 %v221
    %273 = vmatpush.msra.mxu0 %v217
    %274 = vmatpush.msra.mxu0 %v213
    %275 = vmatpush.msra.mxu0 %v209
    %276 = vmatpush.msra.mxu0 %v205
    %277 = vmatpush.msra.mxu0 %v201
    %278 = vmatpush.msra.mxu0 %v197
    %279 = vmatpush.msra.mxu0 %v193
    %280 = vmatpush.msra.mxu0 %v189
    %281 = vmatpush.msra.mxu0 %v185
    %282 = vmatpush.msra.mxu0 %v181
    %283 = vmatpush.msra.mxu0 %v177
    %284 = vmatpush.msra.mxu0 %v173
    %285 = vmatmul.f32.gmra.mxu0 %v170
    %v286 = vpop.f32.mrf.mxu0
    %v287 = vadd.f32 %v239, %v286
    %288 = vmatmul.f32.gmra.mxu0 %v171
    %v289 = vpop.f32.mrf.mxu0
    %v290 = vadd.f32 %v239, %v289
    %291 = vdwg.mxu0
    %292 = vmatpush.msra.mxu0 %v234
    %293 = vmatpush.msra.mxu0 %v230
    %294 = vmatpush.msra.mxu0 %v226
    %295 = vmatpush.msra.mxu0 %v222
    %296 = vmatpush.msra.mxu0 %v218
    %297 = vmatpush.msra.mxu0 %v214
    %298 = vmatpush.msra.mxu0 %v210
    %299 = vmatpush.msra.mxu0 %v206
    %300 = vmatpush.msra.mxu0 %v202
    %301 = vmatpush.msra.mxu0 %v198
    %302 = vmatpush.msra.mxu0 %v194
    %303 = vmatpush.msra.mxu0 %v190
    %304 = vmatpush.msra.mxu0 %v186
    %305 = vmatpush.msra.mxu0 %v182
    %306 = vmatpush.msra.mxu0 %v178
    %307 = vmatpush.msra.mxu0 %v174
    %308 = vmatmul.f32.gmra.mxu0 %v170
    %v309 = vpop.f32.mrf.mxu0
    %v310 = vadd.f32 %v240, %v309
    %311 = vmatmul.f32.gmra.mxu0 %v171
    %v312 = vpop.f32.mrf.mxu0
    %v313 = vadd.f32 %v240, %v312
    %314 = vdwg.mxu0
    %315 = vmatpush.msra.mxu0 %v235
    %316 = vmatpush.msra.mxu0 %v231
    %317 = vmatpush.msra.mxu0 %v227
    %318 = vmatpush.msra.mxu0 %v223
    %319 = vmatpush.msra.mxu0 %v219
    %320 = vmatpush.msra.mxu0 %v215
    %321 = vmatpush.msra.mxu0 %v211
    %322 = vmatpush.msra.mxu0 %v207
    %323 = vmatpush.msra.mxu0 %v203
    %324 = vmatpush.msra.mxu0 %v199
    %325 = vmatpush.msra.mxu0 %v195
    %326 = vmatpush.msra.mxu0 %v191
    %327 = vmatpush.msra.mxu0 %v187
    %328 = vmatpush.msra.mxu0 %v183
    %329 = vmatpush.msra.mxu0 %v179
    %330 = vmatpush.msra.mxu0 %v175
    %331 = vmatmul.f32.gmra.mxu0 %v170
    %v332 = vpop.f32.mrf.mxu0
    %v333 = vadd.f32 %v241, %v332
    %334 = vmatmul.f32.gmra.mxu0 %v171
    %v335 = vpop.f32.mrf.mxu0
    %v336 = vadd.f32 %v241, %v335
    %337 = vdwg.mxu0
    %v338 = vxor.u32 %v264, 2147483648
    %v339 = vxor.u32 %v287, 2147483648
    %v340 = vxor.u32 %v310, 2147483648
    %v341 = vxor.u32 %v333, 2147483648
    %v342 = vxor.u32 %v267, 2147483648
    %v343 = vxor.u32 %v290, 2147483648
    %v344 = vxor.u32 %v313, 2147483648
    %v345 = vxor.u32 %v336, 2147483648
    %v346 = vmul.f32 %v338, 1.442695
    %v347 = vpow.pop %v346
    %v348 = vmul.f32 %v339, 1.442695
    %v349 = vpow.pop %v348
    %v350 = vmul.f32 %v340, 1.442695
    %v351 = vpow.pop %v350
    %v352 = vmul.f32 %v341, 1.442695
    %v353 = vpow.pop %v352
    %v354 = vmul.f32 %v342, 1.442695
    %v355 = vpow.pop %v354
    %v356 = vmul.f32 %v343, 1.442695
    %v357 = vpow.pop %v356
    %v358 = vmul.f32 %v344, 1.442695
    %v359 = vpow.pop %v358
    %v360 = vmul.f32 %v345, 1.442695
    %v361 = vpow.pop %v360
    %v362 = vadd.f32 %v347, 1.0
    %v363 = vadd.f32 %v349, 1.0
    %v364 = vadd.f32 %v351, 1.0
    %v365 = vadd.f32 %v353, 1.0
    %v366 = vadd.f32 %v355, 1.0
    %v367 = vadd.f32 %v357, 1.0
    %v368 = vadd.f32 %v359, 1.0
    %v369 = vadd.f32 %v361, 1.0
    %v370 = vrcp.pop %v362
    %v371 = vmul.f32 %v362, %v370
    %v372 = vsub.f32 1.0, %v371
    %v373 = vmul.f32 %v370, %v372
    %v374 = vadd.f32 %v370, %v373
    %vm375 = vweird.f32 %v362
    %vm376 = vweird.f32 %v370
    %vm377 = vmor %vm375, %vm376
    %v378 = vsel %vm377, %v370, %v374
    %v379 = vand.u32 2147483647, %v362
    %vm380 = vcmp.eq.f32.partialorder %v379, 8.507059e+37
    %v381 = vand.u32 %v362, 2147483648
    %v382 = vor.u32 1.1754944e-38, %v381
    %v383 = vsel %vm380, %v382, %v378
    %v384 = vmul.f32 1.0, %v383
    %v385 = vrcp.pop %v363
    %v386 = vmul.f32 %v363, %v385
    %v387 = vsub.f32 1.0, %v386
    %v388 = vmul.f32 %v385, %v387
    %v389 = vadd.f32 %v385, %v388
    %vm390 = vweird.f32 %v363
    %vm391 = vweird.f32 %v385
    %vm392 = vmor %vm390, %vm391
    %v393 = vsel %vm392, %v385, %v389
    %v394 = vand.u32 2147483647, %v363
    %vm395 = vcmp.eq.f32.partialorder %v394, 8.507059e+37
    %v396 = vand.u32 %v363, 2147483648
    %v397 = vor.u32 1.1754944e-38, %v396
    %v398 = vsel %vm395, %v397, %v393
    %v399 = vmul.f32 1.0, %v398
    %v400 = vrcp.pop %v364
    %v401 = vmul.f32 %v364, %v400
    %v402 = vsub.f32 1.0, %v401
    %v403 = vmul.f32 %v400, %v402
    %v404 = vadd.f32 %v400, %v403
    %vm405 = vweird.f32 %v364
    %vm406 = vweird.f32 %v400
    %vm407 = vmor %vm405, %vm406
    %v408 = vsel %vm407, %v400, %v404
    %v409 = vand.u32 2147483647, %v364
    %vm410 = vcmp.eq.f32.partialorder %v409, 8.507059e+37
    %v411 = vand.u32 %v364, 2147483648
    %v412 = vor.u32 1.1754944e-38, %v411
    %v413 = vsel %vm410, %v412, %v408
    %v414 = vmul.f32 1.0, %v413
    %v415 = vrcp.pop %v365
    %v416 = vmul.f32 %v365, %v415
    %v417 = vsub.f32 1.0, %v416
    %v418 = vmul.f32 %v415, %v417
    %v419 = vadd.f32 %v415, %v418
    %vm420 = vweird.f32 %v365
    %vm421 = vweird.f32 %v415
    %vm422 = vmor %vm420, %vm421
    %v423 = vsel %vm422, %v415, %v419
    %v424 = vand.u32 2147483647, %v365
    %vm425 = vcmp.eq.f32.partialorder %v424, 8.507059e+37
    %v426 = vand.u32 %v365, 2147483648
    %v427 = vor.u32 1.1754944e-38, %v426
    %v428 = vsel %vm425, %v427, %v423
    %v429 = vmul.f32 1.0, %v428
    %v430 = vrcp.pop %v366
    %v431 = vmul.f32 %v366, %v430
    %v432 = vsub.f32 1.0, %v431
    %v433 = vmul.f32 %v430, %v432
    %v434 = vadd.f32 %v430, %v433
    %vm435 = vweird.f32 %v366
    %vm436 = vweird.f32 %v430
    %vm437 = vmor %vm435, %vm436
    %v438 = vsel %vm437, %v430, %v434
    %v439 = vand.u32 2147483647, %v366
    %vm440 = vcmp.eq.f32.partialorder %v439, 8.507059e+37
    %v441 = vand.u32 %v366, 2147483648
    %v442 = vor.u32 1.1754944e-38, %v441
    %v443 = vsel %vm440, %v442, %v438
    %v444 = vmul.f32 1.0, %v443
    %v445 = vrcp.pop %v367
    %v446 = vmul.f32 %v367, %v445
    %v447 = vsub.f32 1.0, %v446
    %v448 = vmul.f32 %v445, %v447
    %v449 = vadd.f32 %v445, %v448
    %vm450 = vweird.f32 %v367
    %vm451 = vweird.f32 %v445
    %vm452 = vmor %vm450, %vm451
    %v453 = vsel %vm452, %v445, %v449
    %v454 = vand.u32 2147483647, %v367
    %vm455 = vcmp.eq.f32.partialorder %v454, 8.507059e+37
    %v456 = vand.u32 %v367, 2147483648
    %v457 = vor.u32 1.1754944e-38, %v456
    %v458 = vsel %vm455, %v457, %v453
    %v459 = vmul.f32 1.0, %v458
    %v460 = vrcp.pop %v368
    %v461 = vmul.f32 %v368, %v460
    %v462 = vsub.f32 1.0, %v461
    %v463 = vmul.f32 %v460, %v462
    %v464 = vadd.f32 %v460, %v463
    %vm465 = vweird.f32 %v368
    %vm466 = vweird.f32 %v460
    %vm467 = vmor %vm465, %vm466
    %v468 = vsel %vm467, %v460, %v464
    %v469 = vand.u32 2147483647, %v368
    %vm470 = vcmp.eq.f32.partialorder %v469, 8.507059e+37
    %v471 = vand.u32 %v368, 2147483648
    %v472 = vor.u32 1.1754944e-38, %v471
    %v473 = vsel %vm470, %v472, %v468
    %v474 = vmul.f32 1.0, %v473
    %v475 = vrcp.pop %v369
    %v476 = vmul.f32 %v369, %v475
    %v477 = vsub.f32 1.0, %v476
    %v478 = vmul.f32 %v475, %v477
    %v479 = vadd.f32 %v475, %v478
    %vm480 = vweird.f32 %v369
    %vm481 = vweird.f32 %v475
    %vm482 = vmor %vm480, %vm481
    %v483 = vsel %vm482, %v475, %v479
    %v484 = vand.u32 2147483647, %v369
    %vm485 = vcmp.eq.f32.partialorder %v484, 8.507059e+37
    %v486 = vand.u32 %v369, 2147483648
    %v487 = vor.u32 1.1754944e-38, %v486
    %v488 = vsel %vm485, %v487, %v483
    %v489 = vmul.f32 1.0, %v488
    %v490 = vmul.f32 %v264, %v384
    %v491 = vmul.f32 %v287, %v399
    %v492 = vmul.f32 %v310, %v414
    %v493 = vmul.f32 %v333, %v429
    %v494 = vmul.f32 %v267, %v444
    %v495 = vmul.f32 %v290, %v459
    %v496 = vmul.f32 %v313, %v474
    %v497 = vmul.f32 %v336, %v489
    %v498 = vld [vmem:[#allocation3] sm:$0xff]
    %v499 = vld [vmem:[#allocation3 + $0x8] sm:$0xff]
    %v500 = vld [vmem:[#allocation12] sm:$0xff]
    %v501 = vld [vmem:[#allocation12 + $0x8] sm:$0xff]
    %v502 = vld [vmem:[#allocation12 + $0x10] sm:$0xff]
    %v503 = vld [vmem:[#allocation12 + $0x18] sm:$0xff]
    %v504 = vld [vmem:[#allocation12 + $0x20] sm:$0xff]
    %v505 = vld [vmem:[#allocation12 + $0x28] sm:$0xff]
    %v506 = vld [vmem:[#allocation12 + $0x30] sm:$0xff]
    %v507 = vld [vmem:[#allocation12 + $0x38] sm:$0xff]
    %v508 = vld [vmem:[#allocation12 + $0x40] sm:$0xff]
    %v509 = vld [vmem:[#allocation12 + $0x48] sm:$0xff]
    %v510 = vld [vmem:[#allocation12 + $0x50] sm:$0xff]
    %v511 = vld [vmem:[#allocation12 + $0x58] sm:$0xff]
    %v512 = vld [vmem:[#allocation12 + $0x60] sm:$0xff]
    %v513 = vld [vmem:[#allocation12 + $0x68] sm:$0xff]
    %v514 = vld [vmem:[#allocation12 + $0x70] sm:$0xff]
    %v515 = vld [vmem:[#allocation12 + $0x78] sm:$0xff]
    %v516 = vld [vmem:[#allocation12 + $0x80] sm:$0xff]
    %v517 = vld [vmem:[#allocation12 + $0x88] sm:$0xff]
    %v518 = vld [vmem:[#allocation12 + $0x90] sm:$0xff]
    %v519 = vld [vmem:[#allocation12 + $0x98] sm:$0xff]
    %v520 = vld [vmem:[#allocation12 + $0xa0] sm:$0xff]
    %v521 = vld [vmem:[#allocation12 + $0xa8] sm:$0xff]
    %v522 = vld [vmem:[#allocation12 + $0xb0] sm:$0xff]
    %v523 = vld [vmem:[#allocation12 + $0xb8] sm:$0xff]
    %v524 = vld [vmem:[#allocation12 + $0xc0] sm:$0xff]
    %v525 = vld [vmem:[#allocation12 + $0xc8] sm:$0xff]
    %v526 = vld [vmem:[#allocation12 + $0xd0] sm:$0xff]
    %v527 = vld [vmem:[#allocation12 + $0xd8] sm:$0xff]
    %v528 = vld [vmem:[#allocation12 + $0xe0] sm:$0xff]
    %v529 = vld [vmem:[#allocation12 + $0xe8] sm:$0xff]
    %v530 = vld [vmem:[#allocation12 + $0xf0] sm:$0xff]
    %v531 = vld [vmem:[#allocation12 + $0xf8] sm:$0xff]
    %v532 = vld [vmem:[#allocation12 + $0x100] sm:$0xff]
    %v533 = vld [vmem:[#allocation12 + $0x108] sm:$0xff]
    %v534 = vld [vmem:[#allocation12 + $0x110] sm:$0xff]
    %v535 = vld [vmem:[#allocation12 + $0x118] sm:$0xff]
    %v536 = vld [vmem:[#allocation12 + $0x120] sm:$0xff]
    %v537 = vld [vmem:[#allocation12 + $0x128] sm:$0xff]
    %v538 = vld [vmem:[#allocation12 + $0x130] sm:$0xff]
    %v539 = vld [vmem:[#allocation12 + $0x138] sm:$0xff]
    %v540 = vld [vmem:[#allocation12 + $0x140] sm:$0xff]
    %v541 = vld [vmem:[#allocation12 + $0x148] sm:$0xff]
    %v542 = vld [vmem:[#allocation12 + $0x150] sm:$0xff]
    %v543 = vld [vmem:[#allocation12 + $0x158] sm:$0xff]
    %v544 = vld [vmem:[#allocation12 + $0x160] sm:$0xff]
    %v545 = vld [vmem:[#allocation12 + $0x168] sm:$0xff]
    %v546 = vld [vmem:[#allocation12 + $0x170] sm:$0xff]
    %v547 = vld [vmem:[#allocation12 + $0x178] sm:$0xff]
    %v548 = vld [vmem:[#allocation12 + $0x180] sm:$0xff]
    %v549 = vld [vmem:[#allocation12 + $0x188] sm:$0xff]
    %v550 = vld [vmem:[#allocation12 + $0x190] sm:$0xff]
    %v551 = vld [vmem:[#allocation12 + $0x198] sm:$0xff]
    %v552 = vld [vmem:[#allocation12 + $0x1a0] sm:$0xff]
    %v553 = vld [vmem:[#allocation12 + $0x1a8] sm:$0xff]
    %v554 = vld [vmem:[#allocation12 + $0x1b0] sm:$0xff]
    %v555 = vld [vmem:[#allocation12 + $0x1b8] sm:$0xff]
    %v556 = vld [vmem:[#allocation12 + $0x1c0] sm:$0xff]
    %v557 = vld [vmem:[#allocation12 + $0x1c8] sm:$0xff]
    %v558 = vld [vmem:[#allocation12 + $0x1d0] sm:$0xff]
    %v559 = vld [vmem:[#allocation12 + $0x1d8] sm:$0xff]
    %v560 = vld [vmem:[#allocation12 + $0x1e0] sm:$0xff]
    %v561 = vld [vmem:[#allocation12 + $0x1e8] sm:$0xff]
    %v562 = vld [vmem:[#allocation12 + $0x1f0] sm:$0xff]
    %v563 = vld [vmem:[#allocation12 + $0x1f8] sm:$0xff]
    %564 = vmatpush.msra.mxu0 %v515
    %565 = vmatpush.msra.mxu0 %v514
    %566 = vmatpush.msra.mxu0 %v513
    %567 = vmatpush.msra.mxu0 %v512
    %568 = vmatpush.msra.mxu0 %v511
    %569 = vmatpush.msra.mxu0 %v510
    %570 = vmatpush.msra.mxu0 %v509
    %571 = vmatpush.msra.mxu0 %v508
    %572 = vmatpush.msra.mxu0 %v507
    %573 = vmatpush.msra.mxu0 %v506
    %574 = vmatpush.msra.mxu0 %v505
    %575 = vmatpush.msra.mxu0 %v504
    %576 = vmatpush.msra.mxu0 %v503
    %577 = vmatpush.msra.mxu0 %v502
    %578 = vmatpush.msra.mxu0 %v501
    %579 = vmatpush.msra.mxu0 %v500
    %580 = vmatmul.f32.gmra.mxu0 %v490
    %v581 = vpop.f32.mrf.mxu0
    %v582 = vadd.f32 0.0, %v581
    %583 = vmatmul.f32.gmra.mxu0 %v494
    %v584 = vpop.f32.mrf.mxu0
    %v585 = vadd.f32 0.0, %v584
    %586 = vdwg.mxu0
    %587 = vmatpush.msra.mxu0 %v531
    %588 = vmatpush.msra.mxu0 %v530
    %589 = vmatpush.msra.mxu0 %v529
    %590 = vmatpush.msra.mxu0 %v528
    %591 = vmatpush.msra.mxu0 %v527
    %592 = vmatpush.msra.mxu0 %v526
    %593 = vmatpush.msra.mxu0 %v525
    %594 = vmatpush.msra.mxu0 %v524
    %595 = vmatpush.msra.mxu0 %v523
    %596 = vmatpush.msra.mxu0 %v522
    %597 = vmatpush.msra.mxu0 %v521
    %598 = vmatpush.msra.mxu0 %v520
    %599 = vmatpush.msra.mxu0 %v519
    %600 = vmatpush.msra.mxu0 %v518
    %601 = vmatpush.msra.mxu0 %v517
    %602 = vmatpush.msra.mxu0 %v516
    %603 = vmatmul.f32.gmra.mxu0 %v491
    %v604 = vpop.f32.mrf.mxu0
    %v605 = vadd.f32 %v582, %v604
    %606 = vmatmul.f32.gmra.mxu0 %v495
    %v607 = vpop.f32.mrf.mxu0
    %v608 = vadd.f32 %v585, %v607
    %609 = vdwg.mxu0
    %610 = vmatpush.msra.mxu0 %v547
    %611 = vmatpush.msra.mxu0 %v546
    %612 = vmatpush.msra.mxu0 %v545
    %613 = vmatpush.msra.mxu0 %v544
    %614 = vmatpush.msra.mxu0 %v543
    %615 = vmatpush.msra.mxu0 %v542
    %616 = vmatpush.msra.mxu0 %v541
    %617 = vmatpush.msra.mxu0 %v540
    %618 = vmatpush.msra.mxu0 %v539
    %619 = vmatpush.msra.mxu0 %v538
    %620 = vmatpush.msra.mxu0 %v537
    %621 = vmatpush.msra.mxu0 %v536
    %622 = vmatpush.msra.mxu0 %v535
    %623 = vmatpush.msra.mxu0 %v534
    %624 = vmatpush.msra.mxu0 %v533
    %625 = vmatpush.msra.mxu0 %v532
    %626 = vmatmul.f32.gmra.mxu0 %v492
    %v627 = vpop.f32.mrf.mxu0
    %v628 = vadd.f32 %v605, %v627
    %629 = vmatmul.f32.gmra.mxu0 %v496
    %v630 = vpop.f32.mrf.mxu0
    %v631 = vadd.f32 %v608, %v630
    %632 = vdwg.mxu0
    %633 = vmatpush.msra.mxu0 %v563
    %634 = vmatpush.msra.mxu0 %v562
    %635 = vmatpush.msra.mxu0 %v561
    %636 = vmatpush.msra.mxu0 %v560
    %637 = vmatpush.msra.mxu0 %v559
    %638 = vmatpush.msra.mxu0 %v558
    %639 = vmatpush.msra.mxu0 %v557
    %640 = vmatpush.msra.mxu0 %v556
    %641 = vmatpush.msra.mxu0 %v555
    %642 = vmatpush.msra.mxu0 %v554
    %643 = vmatpush.msra.mxu0 %v553
    %644 = vmatpush.msra.mxu0 %v552
    %645 = vmatpush.msra.mxu0 %v551
    %646 = vmatpush.msra.mxu0 %v550
    %647 = vmatpush.msra.mxu0 %v549
    %648 = vmatpush.msra.mxu0 %v548
    %649 = vmatmul.f32.gmra.mxu0 %v493
    %v650 = vpop.f32.mrf.mxu0
    %v651 = vadd.f32 %v628, %v650
    %652 = vmatmul.f32.gmra.mxu0 %v497
    %v653 = vpop.f32.mrf.mxu0
    %v654 = vadd.f32 %v631, %v653
    %655 = vdwg.mxu0
    %v656 = vadd.f32 %v498, %v651
    %v657 = vadd.f32 %v499, %v654
    %658 = vst [vmem:[#allocation3] sm:$0xff] %v656
    %659 = vst [vmem:[#allocation3 + $0x8] sm:$0xff] %v657
    // Predicated region
    $region54: #{tpu_custom_call.1} parent=1 // pred_check
      %p660 = pneg %p101
    $region55: #{tpu_custom_call.1} parent=1 // pred_check_branch
      %662 = sbr.rel (%p660) target = $region57
    $region56: #{tpu_custom_call.1} parent=1 // pred_region
      %v663 = vld [vmem:[#allocation3] sm:$0xff]
      %v664 = vld [vmem:[#allocation3 + $0x8] sm:$0xff]
      %v665 = vld [vmem:[%s6] sm:$0x1]
      %v667 = vperm.slane %v665, 0
      %v669 = vadd.f32 %v663, %v667
      %v670 = vadd.f32 %v664, %v667
      %671 = vst [vmem:[#allocation13] sm:$0xff] %v669
      %672 = vst [vmem:[#allocation13 + $0x8] sm:$0xff] %v670
    $region57: #{tpu_custom_call.1} parent=1 // pred_fallthru
      _
    // Predicated region
    $region58: #{tpu_custom_call.1} parent=1 // pred_check
      _
    $region59: #{tpu_custom_call.1} parent=1 // pred_check_branch
      %674 = sbr.rel (0) target = $region61
    $region60: #{tpu_custom_call.1} parent=1 // pred_region
      %676 = vsyncadd [#allocation6], 0
      %s677 = sshll.u32 [#allocation13], 4
      %s678 = int_to_ptr.vmem [resolvable:$true] %s677
      %s679 = sshll.u32 %s7, 4
      %s680 = int_to_ptr.hbm [resolvable:$true] %s679
      %685 = dma.vmem_to_hbm [thread:$0]  %s678, 256, %s680, [#allocation6], 128, 128, 8
    $region61: #{tpu_custom_call.1} parent=1 // pred_fallthru
      _
    // Predicated region
    $region62: #{tpu_custom_call.1} parent=1 // pred_check
      _
    $region63: #{tpu_custom_call.1} parent=1 // pred_check_branch
      %687 = sbr.rel (0) target = $region65
    $region64: #{tpu_custom_call.1} parent=1 // pred_region
      %689 = dma.done [#allocation6], 256
    $region65: #{tpu_custom_call.1} parent=1 // pred_fallthru
      _
    %690 = vsyncpa [#allocation5], 1
    %691 = vsyncpa [#allocation8], 1
    %692 = vsyncpa [#allocation11], 1
    %693 = vsyncpa [#allocation6], 1

</llo_original>
